<compile_context>
chip_gen: v7x
topology: tpu7x:2x2x1
jax: 0.10.0
libtpu: 0.0.40
codegen_flags: <defaults>
</compile_context>

<pallas_src>
import math
import functools

import jax
import jax.numpy as jnp
from jax.experimental import pallas as pl
from jax.experimental.pallas import tpu as pltpu

HIDDEN = 256


def _round_up(x, m):
    return (x + m - 1) // m * m


def _critic_kernel(sa_ref,
                   w14_ref, b14_ref,
                   w2_ref, b2_ref, w5_ref, b5_ref,
                   w36_ref, b36_ref,
                   out_ref):
    # ---- fused layer 1 of both heads (single K=D matmul): (TB, 2*HIDDEN) ----
    hg = (jnp.dot(sa_ref[...], w14_ref[...], preferred_element_type=jnp.float32)
          + b14_ref[...])
    # bf16 ReLU after the f32 bias-add: cast is required anyway for the
    # layer-2 matmul and max() commutes with the monotone cast.
    hg = jnp.maximum(hg.astype(jnp.bfloat16), 0.0)

    h = hg[:, :HIDDEN]          # Q1 branch (lane-aligned slice)
    g = hg[:, HIDDEN:]          # Q2 branch

    # ---- layer 2 (256x256) per head: bf16 MXU inputs, f32 accumulate ----
    h2 = jnp.maximum(
        jnp.dot(h, w2_ref[...], preferred_element_type=jnp.float32) + b2_ref[...],
        0.0)
    g2 = jnp.maximum(
        jnp.dot(g, w5_ref[...], preferred_element_type=jnp.float32) + b5_ref[...],
        0.0)

    # ---- N=1 output projections: VPU multiply + lane reduction (off MXU) ----
    q1 = jnp.sum(h2 * w36_ref[0:1, :], axis=-1, keepdims=True) + b36_ref[:, 0:1]
    q2 = jnp.sum(g2 * w36_ref[1:2, :], axis=-1, keepdims=True) + b36_ref[:, 1:2]

    # Single merged (TB, 2) store.
    # TODO(synk): a lane-dense (2, TB) output block (unmasked vst) was
    # suggested, but it needs an in-kernel (TB,2)->(2,TB) relayout; the win is
    # tiny at this output size, so it stays batch-major for lowering safety.
    out_ref[...] = jnp.concatenate([q1, q2], axis=-1).astype(out_ref.dtype)


def prepare_critic_params(params):
    """One-time fold of PyTorch-layout params into the kernel layout.

    Hoisted out of the hot path: these ~8 small XLA ops (concats, transposes,
    bf16 casts) would otherwise run on every forward call and dominate wall
    time at small RL batch sizes.
    """
    (w1, b1, w2, b2, w3, b3, w4, b4, w5, b5, w6, b6) = params
    w14 = jnp.concatenate([w1, w4], axis=1).astype(jnp.bfloat16)   # (D, 512)
    b14 = jnp.concatenate([b1, b4], axis=1)                        # (1, 512) f32
    w2b = w2.astype(jnp.bfloat16)                                  # (256, 256)
    w5b = w5.astype(jnp.bfloat16)                                  # (256, 256)
    w36 = jnp.concatenate([w3.T, w6.T], axis=0)                    # (2, 256) f32
    b36 = jnp.concatenate([b3, b6], axis=1)                        # (1, 2)   f32
    return (w14, b14, w2b, b2, w5b, b5, w36, b36)


@functools.partial(jax.jit, static_argnames=("block_b",))
def critic_forward(state, action, folded_params, block_b=1024):
    """Equivalent of Critic.forward(state, action) -> (q1, q2)."""
    (w14, b14, w2b, b2, w5b, b5, w36, b36) = folded_params
    B = state.shape[0]
    D = w14.shape[0]                      # state_dim + action_dim

    # Single fused layer-1 input: state||action in bf16 for the MXU.
    sa = jnp.concatenate([state, action], axis=1).astype(jnp.bfloat16)

    # ---- batch tiling ----
    # >=2 grid steps whenever B > 16 so ("parallel",) can shard the grid
    # across both v7x TensorCores; capped at block_b (footprint < 4 MiB so
    # large tiles amortize the ~0.35 us per-step overhead on v5e/v6e).
    tb = min(block_b, _round_up(max(pl.cdiv(B, 2), 1), 16))
    b_pad = _round_up(B, tb)
    if b_pad != B:
        sa = jnp.pad(sa, ((0, b_pad - B), (0, 0)))
    nb = b_pad // tb

    def tiled(shape):
        return pl.BlockSpec(shape, lambda i: (i, 0))

    def resident(shape):
        # Constant index_map: DMA'd once, stays VMEM-resident across the grid.
        # TODO(synk): pipeline_mode=pl.Buffered(1) would drop the redundant
        # second buffer for these; left at default for lowering safety.
        return pl.BlockSpec(shape, lambda i: (0, 0))

    out = pl.pallas_call(
        _critic_kernel,
        out_shape=jax.ShapeDtypeStruct((b_pad, 2), jnp.float32),
        grid=(nb,),
        in_specs=[
            tiled((tb, D)),                    # state||action tile
            resident((D, 2 * HIDDEN)),         # W1 | W4
            resident((1, 2 * HIDDEN)),         # b1 | b4
            resident((HIDDEN, HIDDEN)),        # W2
            resident((1, HIDDEN)),             # b2
            resident((HIDDEN, HIDDEN)),        # W5
            resident((1, HIDDEN)),             # b5
            resident((2, HIDDEN)),             # W3^T | W6^T
            resident((1, 2)),                  # b3 | b6
        ],
        out_specs=tiled((tb, 2)),
        compiler_params=pltpu.CompilerParams(
            dimension_semantics=("parallel",)),
    )(sa, w14, b14, w2b, b2, w5b, b5, w36, b36)

    q = out[:B]
    return q[:, 0:1], q[:, 1:2]


def init_critic_params(state_dim, action_dim, key):
    """nn.Linear default init: U(-1/sqrt(fan_in), 1/sqrt(fan_in)).

    Weights stored transposed vs PyTorch (shape [in, out]); biases [1, out].
    """
    def linear(key, fan_in, fan_out):
        kw, kb = jax.random.split(key)
        bound = 1.0 / math.sqrt(fan_in)
        w = jax.random.uniform(kw, (fan_in, fan_out), jnp.float32, -bound, bound)
        b = jax.random.uniform(kb, (1, fan_out), jnp.float32, -bound, bound)
        return w, b

    in_dim = state_dim + action_dim
    keys = jax.random.split(key, 6)
    w1, b1 = linear(keys[0], in_dim, HIDDEN)
    w2, b2 = linear(keys[1], HIDDEN, HIDDEN)
    w3, b3 = linear(keys[2], HIDDEN, 1)
    w4, b4 = linear(keys[3], in_dim, HIDDEN)
    w5, b5 = linear(keys[4], HIDDEN, HIDDEN)
    w6, b6 = linear(keys[5], HIDDEN, 1)
    return (w1, b1, w2, b2, w3, b3, w4, b4, w5, b5, w6, b6)


def _reference_forward(state, action, params):
    """Pure-JAX f32 reference for correctness check."""
    (w1, b1, w2, b2, w3, b3, w4, b4, w5, b5, w6, b6) = params
    sa = jnp.concatenate([state, action], axis=1)
    q1 = jax.nn.relu(sa @ w1 + b1)
    q1 = jax.nn.relu(q1 @ w2 + b2)
    q1 = q1 @ w3 + b3
    q2 = jax.nn.relu(sa @ w4 + b4)
    q2 = jax.nn.relu(q2 @ w5 + b5)
    q2 = q2 @ w6 + b6
    return q1, q2


if __name__ == "__main__":
    state_dim, action_dim, batch = 12, 4, 8

    key = jax.random.PRNGKey(0)
    kp, ks, ka = jax.random.split(key, 3)

    params = init_critic_params(state_dim, action_dim, kp)
    folded = prepare_critic_params(params)     # one-time, off the hot path
    state = jax.random.normal(ks, (batch, state_dim), jnp.float32)
    action = jax.random.normal(ka, (batch, action_dim), jnp.float32)

    q1, q2 = critic_forward(state, action, folded)
    jax.block_until_ready((q1, q2))

    q1_ref, q2_ref = _reference_forward(state, action, params)
    assert q1.shape == (batch, 1) and q2.shape == (batch, 1)
    # bf16 MXU inputs with f32 accumulation -> loosened tolerance vs f32 ref.
    assert jnp.allclose(q1, q1_ref, atol=3e-2, rtol=3e-2), float(jnp.max(jnp.abs(q1 - q1_ref)))
    assert jnp.allclose(q2, q2_ref, atol=3e-2, rtol=3e-2), float(jnp.max(jnp.abs(q2 - q2_ref)))

    print("KERNEL_OK")
</pallas_src>

<mosaic_0001>
module attributes {stable_mosaic.version = 11 : i64} {
  func.func @_critic_kernel(%arg0: i32, %arg1: memref<16x16xbf16, #tpu.memory_space<vmem>>, %arg2: memref<16x512xbf16, #tpu.memory_space<vmem>>, %arg3: memref<1x512xf32, #tpu.memory_space<vmem>>, %arg4: memref<256x256xbf16, #tpu.memory_space<vmem>>, %arg5: memref<1x256xf32, #tpu.memory_space<vmem>>, %arg6: memref<256x256xbf16, #tpu.memory_space<vmem>>, %arg7: memref<1x256xf32, #tpu.memory_space<vmem>>, %arg8: memref<2x256xf32, #tpu.memory_space<vmem>>, %arg9: memref<1x2xf32, #tpu.memory_space<vmem>>, %arg10: memref<16x2xf32, #tpu.memory_space<vmem>>) attributes {dimension_semantics = [#tpu.dimension_semantics<parallel>], iteration_bounds = array<i64: 1>, scalar_prefetch = 0 : i64, scratch_operands = 0 : i64, tpu.core_type = #tpu.core_type<tc>, window_params = [{transform_indices = @transform_0, window_bounds = array<i64: 16, 16>}, {pipeline_mode = #tpu.pipeline_mode<synchronous>, transform_indices = @transform_1, window_bounds = array<i64: 16, 512>}, {pipeline_mode = #tpu.pipeline_mode<synchronous>, transform_indices = @transform_2, window_bounds = array<i64: 1, 512>}, {pipeline_mode = #tpu.pipeline_mode<synchronous>, transform_indices = @transform_3, window_bounds = array<i64: 256, 256>}, {pipeline_mode = #tpu.pipeline_mode<synchronous>, transform_indices = @transform_4, window_bounds = array<i64: 1, 256>}, {pipeline_mode = #tpu.pipeline_mode<synchronous>, transform_indices = @transform_5, window_bounds = array<i64: 256, 256>}, {pipeline_mode = #tpu.pipeline_mode<synchronous>, transform_indices = @transform_6, window_bounds = array<i64: 1, 256>}, {pipeline_mode = #tpu.pipeline_mode<synchronous>, transform_indices = @transform_7, window_bounds = array<i64: 2, 256>}, {pipeline_mode = #tpu.pipeline_mode<synchronous>, transform_indices = @transform_8, window_bounds = array<i64: 1, 2>}, {transform_indices = @transform_9, window_bounds = array<i64: 16, 2>}]} {
    %c0 = arith.constant 0 : index
    %c0_0 = arith.constant 0 : index
    %0 = vector.load %arg1[%c0, %c0_0] : memref<16x16xbf16, #tpu.memory_space<vmem>>, vector<16x16xbf16>
    %c0_1 = arith.constant 0 : index
    %c0_2 = arith.constant 0 : index
    %1 = vector.load %arg2[%c0_1, %c0_2] : memref<16x512xbf16, #tpu.memory_space<vmem>>, vector<16x512xbf16>
    %cst = arith.constant dense<0.000000e+00> : vector<16x512xf32>
    %2 = tpu.matmul %0, %1, %cst {dimension_numbers = #tpu.dot_dimension_numbers<[1], [0], [0], [1], [0, 0, 1, 1], [], []>} : vector<16x16xbf16>, vector<16x512xbf16>, vector<16x512xf32> -> vector<16x512xf32>
    %c0_3 = arith.constant 0 : index
    %c0_4 = arith.constant 0 : index
    %3 = vector.load %arg3[%c0_3, %c0_4] : memref<1x512xf32, #tpu.memory_space<vmem>>, vector<1x512xf32>
    %4 = vector.broadcast %3 : vector<1x512xf32> to vector<16x512xf32>
    %5 = arith.addf %2, %4 : vector<16x512xf32>
    %6 = arith.truncf %5 : vector<16x512xf32> to vector<16x512xbf16>
    %cst_5 = arith.constant 0.000000e+00 : bf16
    %7 = vector.broadcast %cst_5 : bf16 to vector<16x512xbf16>
    %8 = arith.maximumf %6, %7 : vector<16x512xbf16>
    %9 = vector.extract_strided_slice %8 {offsets = [0, 0], sizes = [16, 256], strides = [1, 1]} : vector<16x512xbf16> to vector<16x256xbf16>
    %10 = vector.extract_strided_slice %8 {offsets = [0, 256], sizes = [16, 256], strides = [1, 1]} : vector<16x512xbf16> to vector<16x256xbf16>
    %c0_6 = arith.constant 0 : index
    %c0_7 = arith.constant 0 : index
    %11 = vector.load %arg4[%c0_6, %c0_7] : memref<256x256xbf16, #tpu.memory_space<vmem>>, vector<256x256xbf16>
    %cst_8 = arith.constant dense<0.000000e+00> : vector<16x256xf32>
    %12 = tpu.matmul %9, %11, %cst_8 {dimension_numbers = #tpu.dot_dimension_numbers<[1], [0], [0], [1], [0, 0, 1, 1], [], []>} : vector<16x256xbf16>, vector<256x256xbf16>, vector<16x256xf32> -> vector<16x256xf32>
    %c0_9 = arith.constant 0 : index
    %c0_10 = arith.constant 0 : index
    %13 = vector.load %arg5[%c0_9, %c0_10] : memref<1x256xf32, #tpu.memory_space<vmem>>, vector<1x256xf32>
    %14 = vector.broadcast %13 : vector<1x256xf32> to vector<16x256xf32>
    %15 = arith.addf %12, %14 : vector<16x256xf32>
    %cst_11 = arith.constant 0.000000e+00 : f32
    %16 = vector.broadcast %cst_11 : f32 to vector<16x256xf32>
    %17 = arith.maximumf %15, %16 : vector<16x256xf32>
    %c0_12 = arith.constant 0 : index
    %c0_13 = arith.constant 0 : index
    %18 = vector.load %arg6[%c0_12, %c0_13] : memref<256x256xbf16, #tpu.memory_space<vmem>>, vector<256x256xbf16>
    %cst_14 = arith.constant dense<0.000000e+00> : vector<16x256xf32>
    %19 = tpu.matmul %10, %18, %cst_14 {dimension_numbers = #tpu.dot_dimension_numbers<[1], [0], [0], [1], [0, 0, 1, 1], [], []>} : vector<16x256xbf16>, vector<256x256xbf16>, vector<16x256xf32> -> vector<16x256xf32>
    %c0_15 = arith.constant 0 : index
    %c0_16 = arith.constant 0 : index
    %20 = vector.load %arg7[%c0_15, %c0_16] : memref<1x256xf32, #tpu.memory_space<vmem>>, vector<1x256xf32>
    %21 = vector.broadcast %20 : vector<1x256xf32> to vector<16x256xf32>
    %22 = arith.addf %19, %21 : vector<16x256xf32>
    %cst_17 = arith.constant 0.000000e+00 : f32
    %23 = vector.broadcast %cst_17 : f32 to vector<16x256xf32>
    %24 = arith.maximumf %22, %23 : vector<16x256xf32>
    %c0_18 = arith.constant 0 : index
    %c0_19 = arith.constant 0 : index
    %25 = vector.load %arg8[%c0_18, %c0_19] : memref<2x256xf32, #tpu.memory_space<vmem>>, vector<1x256xf32>
    %26 = vector.broadcast %25 : vector<1x256xf32> to vector<16x256xf32>
    %27 = arith.mulf %17, %26 : vector<16x256xf32>
    %cst_20 = arith.constant dense<0.000000e+00> : vector<16xf32>
    %28 = vector.multi_reduction <add>, %27, %cst_20 [1] : vector<16x256xf32> to vector<16xf32>
    %29 = vector.shape_cast %28 : vector<16xf32> to vector<16x1xf32>
    %c0_21 = arith.constant 0 : index
    %c0_22 = arith.constant 0 : index
    %30 = vector.load %arg9[%c0_21, %c0_22] : memref<1x2xf32, #tpu.memory_space<vmem>>, vector<1x1xf32>
    %31 = vector.broadcast %30 : vector<1x1xf32> to vector<16x1xf32>
    %32 = arith.addf %29, %31 : vector<16x1xf32>
    %c1 = arith.constant 1 : index
    %c0_23 = arith.constant 0 : index
    %33 = vector.load %arg8[%c1, %c0_23] : memref<2x256xf32, #tpu.memory_space<vmem>>, vector<1x256xf32>
    %34 = vector.broadcast %33 : vector<1x256xf32> to vector<16x256xf32>
    %35 = arith.mulf %24, %34 : vector<16x256xf32>
    %cst_24 = arith.constant dense<0.000000e+00> : vector<16xf32>
    %36 = vector.multi_reduction <add>, %35, %cst_24 [1] : vector<16x256xf32> to vector<16xf32>
    %37 = vector.shape_cast %36 : vector<16xf32> to vector<16x1xf32>
    %c0_25 = arith.constant 0 : index
    %c1_26 = arith.constant 1 : index
    %38 = vector.load %arg9[%c0_25, %c1_26] : memref<1x2xf32, #tpu.memory_space<vmem>>, vector<1x1xf32>
    %39 = vector.broadcast %38 : vector<1x1xf32> to vector<16x1xf32>
    %40 = arith.addf %37, %39 : vector<16x1xf32>
    %41 = tpu.concatenate %32, %40 in 1 : vector<16x1xf32>, vector<16x1xf32> -> vector<16x2xf32>
    %c0_27 = arith.constant 0 : index
    %c0_28 = arith.constant 0 : index
    %42 = vector.load %arg10[%c0_27, %c0_28] : memref<16x2xf32, #tpu.memory_space<vmem>>, vector<16x2xf32>
    tpu.vector_store %arg10[%c0_27, %c0_28], %41 {strides = array<i32>} : memref<16x2xf32, #tpu.memory_space<vmem>>, vector<16x2xf32>,
    return
  }
  func.func @transform_0(%arg0: i32) -> (i32, i32) {
    %c0_i32 = arith.constant 0 : i32
    %c0_i32_0 = arith.constant 0 : i32
    return %arg0, %c0_i32 : i32, i32
  }
  func.func @transform_1(%arg0: i32) -> (i32, i32) {
    %c0_i32 = arith.constant 0 : i32
    %c0_i32_0 = arith.constant 0 : i32
    %c0_i32_1 = arith.constant 0 : i32
    return %c0_i32, %c0_i32_0 : i32, i32
  }
  func.func @transform_2(%arg0: i32) -> (i32, i32) {
    %c0_i32 = arith.constant 0 : i32
    %c0_i32_0 = arith.constant 0 : i32
    %c0_i32_1 = arith.constant 0 : i32
    return %c0_i32, %c0_i32_0 : i32, i32
  }
  func.func @transform_3(%arg0: i32) -> (i32, i32) {
    %c0_i32 = arith.constant 0 : i32
    %c0_i32_0 = arith.constant 0 : i32
    %c0_i32_1 = arith.constant 0 : i32
    return %c0_i32, %c0_i32_0 : i32, i32
  }
  func.func @transform_4(%arg0: i32) -> (i32, i32) {
    %c0_i32 = arith.constant 0 : i32
    %c0_i32_0 = arith.constant 0 : i32
    %c0_i32_1 = arith.constant 0 : i32
    return %c0_i32, %c0_i32_0 : i32, i32
  }
  func.func @transform_5(%arg0: i32) -> (i32, i32) {
    %c0_i32 = arith.constant 0 : i32
    %c0_i32_0 = arith.constant 0 : i32
    %c0_i32_1 = arith.constant 0 : i32
    return %c0_i32, %c0_i32_0 : i32, i32
  }
  func.func @transform_6(%arg0: i32) -> (i32, i32) {
    %c0_i32 = arith.constant 0 : i32
    %c0_i32_0 = arith.constant 0 : i32
    %c0_i32_1 = arith.constant 0 : i32
    return %c0_i32, %c0_i32_0 : i32, i32
  }
  func.func @transform_7(%arg0: i32) -> (i32, i32) {
    %c0_i32 = arith.constant 0 : i32
    %c0_i32_0 = arith.constant 0 : i32
    %c0_i32_1 = arith.constant 0 : i32
    return %c0_i32, %c0_i32_0 : i32, i32
  }
  func.func @transform_8(%arg0: i32) -> (i32, i32) {
    %c0_i32 = arith.constant 0 : i32
    %c0_i32_0 = arith.constant 0 : i32
    %c0_i32_1 = arith.constant 0 : i32
    return %c0_i32, %c0_i32_0 : i32, i32
  }
  func.func @transform_9(%arg0: i32) -> (i32, i32) {
    %c0_i32 = arith.constant 0 : i32
    %c0_i32_0 = arith.constant 0 : i32
    return %arg0, %c0_i32 : i32, i32
  }
}

</mosaic_0001>

<llo_original>
// kernel: critic_forward.1
$region0: #{critic_forward.1}
  #allocation0 [shape = 'u32[]', space=smem, size = 0x4, offset = 0x4, fixed_abs, tag = 'smem constant byte address 0x4 - core index']
  #allocation1 [shape = 'u32[144,128]{1,0:T(1,128)}', space=vmem, size = 0x12000, scoped, tag = 'internal scratch']
  %s0 = inlined_call_operand.vmem [shape: bf16[16,16], index: 0, kind: input, shape index: {}]
  %s1 = inlined_call_operand.vmem [shape: bf16[16,512], index: 1, kind: input, shape index: {}]
  %s2 = inlined_call_operand.vmem [shape: f32[1,512], index: 2, kind: input, shape index: {}]
  %s3 = inlined_call_operand.hbm [shape: bf16[256,256], index: 3, kind: input, shape index: {}]
  %s4 = inlined_call_operand.vmem [shape: f32[1,256], index: 4, kind: input, shape index: {}]
  %s5 = inlined_call_operand.hbm [shape: bf16[256,256], index: 5, kind: input, shape index: {}]
  %s6 = inlined_call_operand.vmem [shape: f32[1,256], index: 6, kind: input, shape index: {}]
  %s7 = inlined_call_operand.vmem [shape: f32[2,256], index: 7, kind: input, shape index: {}]
  %s8 = inlined_call_operand.vmem [shape: f32[1,2], index: 8, kind: input, shape index: {}]
  %s9 = inlined_call_operand.vmem [shape: f32[16,2], index: 9, kind: output, shape index: {}]
  %s10 = sld [smem:[#allocation0]]
  $region54: #{critic_forward.1} parent=0
    _
  %s12 = ssub.s32 1, %s10
  %s13 = scalar_select 0, %s12, %s10
  $region1: #{critic_forward.1} parent=0
    #allocation2 [shape = 'u8[131072]{0}', space=vmem, size = 0x20000, scoped, tag = 'input window, operand 3, single buffered']
    #allocation3 [shape = 's32[1]{0}', space=sflag, size = 0x4, scoped, tag = 'scoped memory for critic_forward.1']
    #allocation4 [shape = 'u8[131072]{0}', space=vmem, size = 0x20000, scoped, tag = 'input window, operand 5, single buffered']
    #allocation5 [shape = 's32[1]{0}', space=sflag, size = 0x4, scoped, tag = 'scoped memory for critic_forward.1']
    %14 = vsyncpa [#allocation3], 0
    %15 = vsyncpa [#allocation5], 0
    // Predicated region
    $region2: #{critic_forward.1} parent=1 // pred_check
      _
    $region3: #{critic_forward.1} parent=1 // pred_check_branch
      %17 = sbr.rel (0) target = $region5
    $region4: #{critic_forward.1} parent=1 // pred_region
      _
    $region5: #{critic_forward.1} parent=1 // pred_fallthru
      _
    // Predicated region
    $region6: #{critic_forward.1} parent=1 // pred_check
      _
    $region7: #{critic_forward.1} parent=1 // pred_check_branch
      %19 = sbr.rel (0) target = $region9
    $region8: #{critic_forward.1} parent=1 // pred_region
      _
    $region9: #{critic_forward.1} parent=1 // pred_fallthru
      _
    // Predicated region
    $region10: #{critic_forward.1} parent=1 // pred_check
      _
    $region11: #{critic_forward.1} parent=1 // pred_check_branch
      %21 = sbr.rel (0) target = $region13
    $region12: #{critic_forward.1} parent=1 // pred_region
      _
    $region13: #{critic_forward.1} parent=1 // pred_fallthru
      _
    // Predicated region
    $region14: #{critic_forward.1} parent=1 // pred_check
      _
    $region15: #{critic_forward.1} parent=1 // pred_check_branch
      %23 = sbr.rel (0) target = $region17
    $region16: #{critic_forward.1} parent=1 // pred_region
      %s25 = ssub.s32 4096, 4096
      %26 = vsyncadd [#allocation3], %s25
      %s27 = sshll.u32 [#allocation2], 4
      %s28 = int_to_ptr.vmem [resolvable:$true] %s27
      %33 = dma.hbm_to_vmem [thread:$0]  %s3, 4096, %s28, [#allocation3], 128, 128, 8
    $region17: #{critic_forward.1} parent=1 // pred_fallthru
      _
    // Predicated region
    $region18: #{critic_forward.1} parent=1 // pred_check
      _
    $region19: #{critic_forward.1} parent=1 // pred_check_branch
      %35 = sbr.rel (0) target = $region21
    $region20: #{critic_forward.1} parent=1 // pred_region
      _
    $region21: #{critic_forward.1} parent=1 // pred_fallthru
      _
    // Predicated region
    $region22: #{critic_forward.1} parent=1 // pred_check
      _
    $region23: #{critic_forward.1} parent=1 // pred_check_branch
      %37 = sbr.rel (0) target = $region25
    $region24: #{critic_forward.1} parent=1 // pred_region
      %s39 = ssub.s32 4096, 4096
      %40 = vsyncadd [#allocation5], %s39
      %s41 = sshll.u32 [#allocation4], 4
      %s42 = int_to_ptr.vmem [resolvable:$true] %s41
      %47 = dma.hbm_to_vmem [thread:$0]  %s5, 4096, %s42, [#allocation5], 128, 128, 8
    $region25: #{critic_forward.1} parent=1 // pred_fallthru
      _
    // Predicated region
    $region26: #{critic_forward.1} parent=1 // pred_check
      _
    $region27: #{critic_forward.1} parent=1 // pred_check_branch
      %49 = sbr.rel (0) target = $region29
    $region28: #{critic_forward.1} parent=1 // pred_region
      _
    $region29: #{critic_forward.1} parent=1 // pred_fallthru
      _
    // Predicated region
    $region30: #{critic_forward.1} parent=1 // pred_check
      _
    $region31: #{critic_forward.1} parent=1 // pred_check_branch
      %51 = sbr.rel (0) target = $region33
    $region32: #{critic_forward.1} parent=1 // pred_region
      _
    $region33: #{critic_forward.1} parent=1 // pred_fallthru
      _
    // Predicated region
    $region34: #{critic_forward.1} parent=1 // pred_check
      _
    $region35: #{critic_forward.1} parent=1 // pred_check_branch
      %53 = sbr.rel (0) target = $region37
    $region36: #{critic_forward.1} parent=1 // pred_region
      _
    $region37: #{critic_forward.1} parent=1 // pred_fallthru
      _
    // Predicated region
    $region38: #{critic_forward.1} parent=1 // pred_check
      _
    $region39: #{critic_forward.1} parent=1 // pred_check_branch
      %55 = sbr.rel (0) target = $region41
    $region40: #{critic_forward.1} parent=1 // pred_region
      %56 = dma.done [#allocation3], 4096
    $region41: #{critic_forward.1} parent=1 // pred_fallthru
      _
    // Predicated region
    $region42: #{critic_forward.1} parent=1 // pred_check
      _
    $region43: #{critic_forward.1} parent=1 // pred_check_branch
      %58 = sbr.rel (0) target = $region45
    $region44: #{critic_forward.1} parent=1 // pred_region
      %59 = dma.done [#allocation5], 4096
    $region45: #{critic_forward.1} parent=1 // pred_fallthru
      _
    %v61 = vld [vmem:[%s0] sm:$0xf]
    %v62 = vld [vmem:[%s0 + $0x4] sm:$0xf]
    %v63 = vld [vmem:[%s1] sm:$0xff]
    %v64 = vld [vmem:[%s1 + $0x8] sm:$0xff]
    %v65 = vld [vmem:[%s1 + $0x10] sm:$0xff]
    %v66 = vld [vmem:[%s1 + $0x18] sm:$0xff]
    %v67 = vld [vmem:[%s2] sm:$0xf]
    %v69 = vlaneseq
    %v70 = vshrl.u32 %v69, 7
    %v71 = vsub.s32 0, %v70
    %v72 = vrot.slane %v67, %v71
    %v73 = vlaneseq
    %v74 = vshrl.u32 %v73, 7
    %v75 = vsub.s32 1, %v74
    %v76 = vrot.slane %v67, %v75
    %v77 = vlaneseq
    %v78 = vshrl.u32 %v77, 7
    %v79 = vsub.s32 2, %v78
    %v80 = vrot.slane %v67, %v79
    %v81 = vlaneseq
    %v82 = vshrl.u32 %v81, 7
    %v83 = vsub.s32 3, %v82
    %v84 = vrot.slane %v67, %v83
    %v91 = vunpack.c.l.b16 %v61
    %v92 = vunpack.c.l.b16 %v62
    %v93 = vpack.c.b16 %v92, %v91
    %v98 = vunpack.c.l.b16 %v63
    %v99 = vunpack.c.h.b16 %v63
    %v100 = vunpack.c.l.b16 %v64
    %v101 = vunpack.c.h.b16 %v64
    %v102 = vunpack.c.l.b16 %v65
    %v103 = vunpack.c.h.b16 %v65
    %v104 = vunpack.c.l.b16 %v66
    %v105 = vunpack.c.h.b16 %v66
    %v106 = vpack.c.b16 %v102, %v98
    %v107 = vpack.c.b16 %v103, %v99
    %v108 = vpack.c.b16 %v104, %v100
    %v109 = vpack.c.b16 %v105, %v101
    %vm114 = vcmask 130048
    %v116 = vsel %vm114, %v93, 0
    %118 = vmatprep.subr.bf16.mxu0 %v107
    %119 = vmatpush1.bf16.msra.mxu0 %v106
    %120 = vmatprep.subr.bf16.mxu0 0
    %121 = vmatpush1.bf16.msra.mxu0 0
    %122 = vmatprep.subr.bf16.mxu0 0
    %123 = vmatpush1.bf16.msra.mxu0 0
    %124 = vmatprep.subr.bf16.mxu0 0
    %125 = vmatpush1.bf16.msra.mxu0 0
    %126 = vmatprep.subr.bf16.mxu0 0
    %127 = vmatpush1.bf16.msra.mxu0 0
    %128 = vmatprep.subr.bf16.mxu0 0
    %129 = vmatpush1.bf16.msra.mxu0 0
    %130 = vmatprep.subr.bf16.mxu0 0
    %131 = vmatpush1.bf16.msra.mxu0 0
    %132 = vmatprep.subr.bf16.mxu0 0
    %133 = vmatpush1.bf16.msra.mxu0 0
    %134 = vmatprep.subr.bf16.mxu0 0
    %135 = vmatpush1.bf16.msra.mxu0 0
    %136 = vmatprep.subr.bf16.mxu0 0
    %137 = vmatpush1.bf16.msra.mxu0 0
    %138 = vmatprep.subr.bf16.mxu0 0
    %139 = vmatpush1.bf16.msra.mxu0 0
    %140 = vmatprep.subr.bf16.mxu0 0
    %141 = vmatpush1.bf16.msra.mxu0 0
    %142 = vmatprep.subr.bf16.mxu0 0
    %143 = vmatpush1.bf16.msra.mxu0 0
    %144 = vmatprep.subr.bf16.mxu0 0
    %145 = vmatpush1.bf16.msra.mxu0 0
    %146 = vmatprep.subr.bf16.mxu0 0
    %147 = vmatpush1.bf16.msra.mxu0 0
    %148 = vmatprep.subr.bf16.mxu0 0
    %149 = vmatpush1.bf16.msra.mxu0 0
    %150 = vmatprep.mubr.bf16.mxu0 0
    %151 = vmatmul.mubr.bf16.gmra.mrb[0].mxu0 %v116
    %v152 = vpop.f32.mrb[0].mxu0
    %v153 = vadd.f32 %v72, %v152
    %v154 = vpop.f32.mrb[0].mxu0
    %v155 = vadd.f32 %v76, %v154
    %v156 = vpop.f32.mrb[0].mxu0
    %v157 = vadd.f32 %v72, %v156
    %v158 = vpop.f32.mrb[0].mxu0
    %v159 = vadd.f32 %v76, %v158
    %160 = vdwg.mxu0
    %161 = vmatprep.subr.bf16.mxu0 %v109
    %162 = vmatpush1.bf16.msra.mxu0 %v108
    %163 = vmatprep.subr.bf16.mxu0 0
    %164 = vmatpush1.bf16.msra.mxu0 0
    %165 = vmatprep.subr.bf16.mxu0 0
    %166 = vmatpush1.bf16.msra.mxu0 0
    %167 = vmatprep.subr.bf16.mxu0 0
    %168 = vmatpush1.bf16.msra.mxu0 0
    %169 = vmatprep.subr.bf16.mxu0 0
    %170 = vmatpush1.bf16.msra.mxu0 0
    %171 = vmatprep.subr.bf16.mxu0 0
    %172 = vmatpush1.bf16.msra.mxu0 0
    %173 = vmatprep.subr.bf16.mxu0 0
    %174 = vmatpush1.bf16.msra.mxu0 0
    %175 = vmatprep.subr.bf16.mxu0 0
    %176 = vmatpush1.bf16.msra.mxu0 0
    %177 = vmatprep.subr.bf16.mxu0 0
    %178 = vmatpush1.bf16.msra.mxu0 0
    %179 = vmatprep.subr.bf16.mxu0 0
    %180 = vmatpush1.bf16.msra.mxu0 0
    %181 = vmatprep.subr.bf16.mxu0 0
    %182 = vmatpush1.bf16.msra.mxu0 0
    %183 = vmatprep.subr.bf16.mxu0 0
    %184 = vmatpush1.bf16.msra.mxu0 0
    %185 = vmatprep.subr.bf16.mxu0 0
    %186 = vmatpush1.bf16.msra.mxu0 0
    %187 = vmatprep.subr.bf16.mxu0 0
    %188 = vmatpush1.bf16.msra.mxu0 0
    %189 = vmatprep.subr.bf16.mxu0 0
    %190 = vmatpush1.bf16.msra.mxu0 0
    %191 = vmatprep.subr.bf16.mxu0 0
    %192 = vmatpush1.bf16.msra.mxu0 0
    %193 = vmatprep.mubr.bf16.mxu0 0
    %194 = vmatmul.mubr.bf16.gmra.mrb[0].mxu0 %v116
    %v195 = vpop.f32.mrb[0].mxu0
    %v196 = vadd.f32 %v80, %v195
    %v197 = vpop.f32.mrb[0].mxu0
    %v198 = vadd.f32 %v84, %v197
    %v199 = vpop.f32.mrb[0].mxu0
    %v200 = vadd.f32 %v80, %v199
    %v201 = vpop.f32.mrb[0].mxu0
    %v202 = vadd.f32 %v84, %v201
    %203 = vdwg.mxu0
    %v204 = vpack.c.bf16 %v157, %v153
    %v205 = vpack.c.bf16 %v159, %v155
    %v206 = vpack.c.bf16 %v200, %v196
    %v207 = vpack.c.bf16 %v202, %v198
    %v208 = vmax.bf16 %v204, 0
    %v209 = vmax.bf16 %v205, 0
    %v210 = vmax.bf16 %v206, 0
    %v211 = vmax.bf16 %v207, 0
    %v212 = vld [vmem:[#allocation2] sm:$0xff]
    %v213 = vld [vmem:[#allocation2 + $0x8] sm:$0xff]
    %v214 = vld [vmem:[#allocation2 + $0x10] sm:$0xff]
    %v215 = vld [vmem:[#allocation2 + $0x18] sm:$0xff]
    %v216 = vld [vmem:[#allocation2 + $0x20] sm:$0xff]
    %v217 = vld [vmem:[#allocation2 + $0x28] sm:$0xff]
    %v218 = vld [vmem:[#allocation2 + $0x30] sm:$0xff]
    %v219 = vld [vmem:[#allocation2 + $0x38] sm:$0xff]
    %v220 = vld [vmem:[#allocation2 + $0x40] sm:$0xff]
    %v221 = vld [vmem:[#allocation2 + $0x48] sm:$0xff]
    %v222 = vld [vmem:[#allocation2 + $0x50] sm:$0xff]
    %v223 = vld [vmem:[#allocation2 + $0x58] sm:$0xff]
    %v224 = vld [vmem:[#allocation2 + $0x60] sm:$0xff]
    %v225 = vld [vmem:[#allocation2 + $0x68] sm:$0xff]
    %v226 = vld [vmem:[#allocation2 + $0x70] sm:$0xff]
    %v227 = vld [vmem:[#allocation2 + $0x78] sm:$0xff]
    %v228 = vld [vmem:[#allocation2 + $0x80] sm:$0xff]
    %v229 = vld [vmem:[#allocation2 + $0x88] sm:$0xff]
    %v230 = vld [vmem:[#allocation2 + $0x90] sm:$0xff]
    %v231 = vld [vmem:[#allocation2 + $0x98] sm:$0xff]
    %v232 = vld [vmem:[#allocation2 + $0xa0] sm:$0xff]
    %v233 = vld [vmem:[#allocation2 + $0xa8] sm:$0xff]
    %v234 = vld [vmem:[#allocation2 + $0xb0] sm:$0xff]
    %v235 = vld [vmem:[#allocation2 + $0xb8] sm:$0xff]
    %v236 = vld [vmem:[#allocation2 + $0xc0] sm:$0xff]
    %v237 = vld [vmem:[#allocation2 + $0xc8] sm:$0xff]
    %v238 = vld [vmem:[#allocation2 + $0xd0] sm:$0xff]
    %v239 = vld [vmem:[#allocation2 + $0xd8] sm:$0xff]
    %v240 = vld [vmem:[#allocation2 + $0xe0] sm:$0xff]
    %v241 = vld [vmem:[#allocation2 + $0xe8] sm:$0xff]
    %v242 = vld [vmem:[#allocation2 + $0xf0] sm:$0xff]
    %v243 = vld [vmem:[#allocation2 + $0xf8] sm:$0xff]
    %v244 = vld [vmem:[%s4] sm:$0x3]
    %v246 = vlaneseq
    %v247 = vshrl.u32 %v246, 7
    %v248 = vsub.s32 0, %v247
    %v249 = vrot.slane %v244, %v248
    %v250 = vlaneseq
    %v251 = vshrl.u32 %v250, 7
    %v252 = vsub.s32 1, %v251
    %v253 = vrot.slane %v244, %v252
    %v288 = vunpack.c.l.b16 %v212
    %v289 = vunpack.c.h.b16 %v212
    %v290 = vunpack.c.l.b16 %v213
    %v291 = vunpack.c.h.b16 %v213
    %v292 = vunpack.c.l.b16 %v214
    %v293 = vunpack.c.h.b16 %v214
    %v294 = vunpack.c.l.b16 %v215
    %v295 = vunpack.c.h.b16 %v215
    %v296 = vunpack.c.l.b16 %v216
    %v297 = vunpack.c.h.b16 %v216
    %v298 = vunpack.c.l.b16 %v217
    %v299 = vunpack.c.h.b16 %v217
    %v300 = vunpack.c.l.b16 %v218
    %v301 = vunpack.c.h.b16 %v218
    %v302 = vunpack.c.l.b16 %v219
    %v303 = vunpack.c.h.b16 %v219
    %v304 = vunpack.c.l.b16 %v220
    %v305 = vunpack.c.h.b16 %v220
    %v306 = vunpack.c.l.b16 %v221
    %v307 = vunpack.c.h.b16 %v221
    %v308 = vunpack.c.l.b16 %v222
    %v309 = vunpack.c.h.b16 %v222
    %v310 = vunpack.c.l.b16 %v223
    %v311 = vunpack.c.h.b16 %v223
    %v312 = vunpack.c.l.b16 %v224
    %v313 = vunpack.c.h.b16 %v224
    %v314 = vunpack.c.l.b16 %v225
    %v315 = vunpack.c.h.b16 %v225
    %v316 = vunpack.c.l.b16 %v226
    %v317 = vunpack.c.h.b16 %v226
    %v318 = vunpack.c.l.b16 %v227
    %v319 = vunpack.c.h.b16 %v227
    %v320 = vunpack.c.l.b16 %v228
    %v321 = vunpack.c.h.b16 %v228
    %v322 = vunpack.c.l.b16 %v229
    %v323 = vunpack.c.h.b16 %v229
    %v324 = vunpack.c.l.b16 %v230
    %v325 = vunpack.c.h.b16 %v230
    %v326 = vunpack.c.l.b16 %v231
    %v327 = vunpack.c.h.b16 %v231
    %v328 = vunpack.c.l.b16 %v232
    %v329 = vunpack.c.h.b16 %v232
    %v330 = vunpack.c.l.b16 %v233
    %v331 = vunpack.c.h.b16 %v233
    %v332 = vunpack.c.l.b16 %v234
    %v333 = vunpack.c.h.b16 %v234
    %v334 = vunpack.c.l.b16 %v235
    %v335 = vunpack.c.h.b16 %v235
    %v336 = vunpack.c.l.b16 %v236
    %v337 = vunpack.c.h.b16 %v236
    %v338 = vunpack.c.l.b16 %v237
    %v339 = vunpack.c.h.b16 %v237
    %v340 = vunpack.c.l.b16 %v238
    %v341 = vunpack.c.h.b16 %v238
    %v342 = vunpack.c.l.b16 %v239
    %v343 = vunpack.c.h.b16 %v239
    %v344 = vunpack.c.l.b16 %v240
    %v345 = vunpack.c.h.b16 %v240
    %v346 = vunpack.c.l.b16 %v241
    %v347 = vunpack.c.h.b16 %v241
    %v348 = vunpack.c.l.b16 %v242
    %v349 = vunpack.c.h.b16 %v242
    %v350 = vunpack.c.l.b16 %v243
    %v351 = vunpack.c.h.b16 %v243
    %v352 = vpack.c.b16 %v290, %v288
    %v353 = vpack.c.b16 %v291, %v289
    %v354 = vpack.c.b16 %v294, %v292
    %v355 = vpack.c.b16 %v295, %v293
    %v356 = vpack.c.b16 %v298, %v296
    %v357 = vpack.c.b16 %v299, %v297
    %v358 = vpack.c.b16 %v302, %v300
    %v359 = vpack.c.b16 %v303, %v301
    %v360 = vpack.c.b16 %v306, %v304
    %v361 = vpack.c.b16 %v307, %v305
    %v362 = vpack.c.b16 %v310, %v308
    %v363 = vpack.c.b16 %v311, %v309
    %v364 = vpack.c.b16 %v314, %v312
    %v365 = vpack.c.b16 %v315, %v313
    %v366 = vpack.c.b16 %v318, %v316
    %v367 = vpack.c.b16 %v319, %v317
    %v368 = vpack.c.b16 %v322, %v320
    %v369 = vpack.c.b16 %v323, %v321
    %v370 = vpack.c.b16 %v326, %v324
    %v371 = vpack.c.b16 %v327, %v325
    %v372 = vpack.c.b16 %v330, %v328
    %v373 = vpack.c.b16 %v331, %v329
    %v374 = vpack.c.b16 %v334, %v332
    %v375 = vpack.c.b16 %v335, %v333
    %v376 = vpack.c.b16 %v338, %v336
    %v377 = vpack.c.b16 %v339, %v337
    %v378 = vpack.c.b16 %v342, %v340
    %v379 = vpack.c.b16 %v343, %v341
    %v380 = vpack.c.b16 %v346, %v344
    %v381 = vpack.c.b16 %v347, %v345
    %v382 = vpack.c.b16 %v350, %v348
    %v383 = vpack.c.b16 %v351, %v349
    %416 = vmatprep.subr.bf16.mxu0 %v353
    %417 = vmatpush1.bf16.msra.mxu0 %v352
    %418 = vmatprep.subr.bf16.mxu0 %v355
    %419 = vmatpush1.bf16.msra.mxu0 %v354
    %420 = vmatprep.subr.bf16.mxu0 %v357
    %421 = vmatpush1.bf16.msra.mxu0 %v356
    %422 = vmatprep.subr.bf16.mxu0 %v359
    %423 = vmatpush1.bf16.msra.mxu0 %v358
    %424 = vmatprep.subr.bf16.mxu0 %v361
    %425 = vmatpush1.bf16.msra.mxu0 %v360
    %426 = vmatprep.subr.bf16.mxu0 %v363
    %427 = vmatpush1.bf16.msra.mxu0 %v362
    %428 = vmatprep.subr.bf16.mxu0 %v365
    %429 = vmatpush1.bf16.msra.mxu0 %v364
    %430 = vmatprep.subr.bf16.mxu0 %v367
    %431 = vmatpush1.bf16.msra.mxu0 %v366
    %432 = vmatprep.subr.bf16.mxu0 %v369
    %433 = vmatpush1.bf16.msra.mxu0 %v368
    %434 = vmatprep.subr.bf16.mxu0 %v371
    %435 = vmatpush1.bf16.msra.mxu0 %v370
    %436 = vmatprep.subr.bf16.mxu0 %v373
    %437 = vmatpush1.bf16.msra.mxu0 %v372
    %438 = vmatprep.subr.bf16.mxu0 %v375
    %439 = vmatpush1.bf16.msra.mxu0 %v374
    %440 = vmatprep.subr.bf16.mxu0 %v377
    %441 = vmatpush1.bf16.msra.mxu0 %v376
    %442 = vmatprep.subr.bf16.mxu0 %v379
    %443 = vmatpush1.bf16.msra.mxu0 %v378
    %444 = vmatprep.subr.bf16.mxu0 %v381
    %445 = vmatpush1.bf16.msra.mxu0 %v380
    %446 = vmatprep.subr.bf16.mxu0 %v383
    %447 = vmatpush1.bf16.msra.mxu0 %v382
    %448 = vmatprep.mubr.bf16.mxu0 %v209
    %449 = vmatmul.mubr.bf16.gmra.mrb[0].mxu0 %v208
    %v450 = vpop.f32.mrb[0].mxu0
    %v451 = vadd.f32 %v249, %v450
    %v452 = vpop.f32.mrb[0].mxu0
    %v453 = vadd.f32 %v253, %v452
    %v454 = vpop.f32.mrb[0].mxu0
    %v455 = vadd.f32 %v249, %v454
    %v456 = vpop.f32.mrb[0].mxu0
    %v457 = vadd.f32 %v253, %v456
    %458 = vdwg.mxu0
    %v459 = vmax.f32 %v451, 0.0
    %v460 = vmax.f32 %v453, 0.0
    %v461 = vmax.f32 %v455, 0.0
    %v462 = vmax.f32 %v457, 0.0
    %v463 = vld [vmem:[#allocation4] sm:$0xff]
    %v464 = vld [vmem:[#allocation4 + $0x8] sm:$0xff]
    %v465 = vld [vmem:[#allocation4 + $0x10] sm:$0xff]
    %v466 = vld [vmem:[#allocation4 + $0x18] sm:$0xff]
    %v467 = vld [vmem:[#allocation4 + $0x20] sm:$0xff]
    %v468 = vld [vmem:[#allocation4 + $0x28] sm:$0xff]
    %v469 = vld [vmem:[#allocation4 + $0x30] sm:$0xff]
    %v470 = vld [vmem:[#allocation4 + $0x38] sm:$0xff]
    %v471 = vld [vmem:[#allocation4 + $0x40] sm:$0xff]
    %v472 = vld [vmem:[#allocation4 + $0x48] sm:$0xff]
    %v473 = vld [vmem:[#allocation4 + $0x50] sm:$0xff]
    %v474 = vld [vmem:[#allocation4 + $0x58] sm:$0xff]
    %v475 = vld [vmem:[#allocation4 + $0x60] sm:$0xff]
    %v476 = vld [vmem:[#allocation4 + $0x68] sm:$0xff]
    %v477 = vld [vmem:[#allocation4 + $0x70] sm:$0xff]
    %v478 = vld [vmem:[#allocation4 + $0x78] sm:$0xff]
    %v479 = vld [vmem:[#allocation4 + $0x80] sm:$0xff]
    %v480 = vld [vmem:[#allocation4 + $0x88] sm:$0xff]
    %v481 = vld [vmem:[#allocation4 + $0x90] sm:$0xff]
    %v482 = vld [vmem:[#allocation4 + $0x98] sm:$0xff]
    %v483 = vld [vmem:[#allocation4 + $0xa0] sm:$0xff]
    %v484 = vld [vmem:[#allocation4 + $0xa8] sm:$0xff]
    %v485 = vld [vmem:[#allocation4 + $0xb0] sm:$0xff]
    %v486 = vld [vmem:[#allocation4 + $0xb8] sm:$0xff]
    %v487 = vld [vmem:[#allocation4 + $0xc0] sm:$0xff]
    %v488 = vld [vmem:[#allocation4 + $0xc8] sm:$0xff]
    %v489 = vld [vmem:[#allocation4 + $0xd0] sm:$0xff]
    %v490 = vld [vmem:[#allocation4 + $0xd8] sm:$0xff]
    %v491 = vld [vmem:[#allocation4 + $0xe0] sm:$0xff]
    %v492 = vld [vmem:[#allocation4 + $0xe8] sm:$0xff]
    %v493 = vld [vmem:[#allocation4 + $0xf0] sm:$0xff]
    %v494 = vld [vmem:[#allocation4 + $0xf8] sm:$0xff]
    %v495 = vld [vmem:[%s6] sm:$0x3]
    %v497 = vlaneseq
    %v498 = vshrl.u32 %v497, 7
    %v499 = vsub.s32 0, %v498
    %v500 = vrot.slane %v495, %v499
    %v501 = vlaneseq
    %v502 = vshrl.u32 %v501, 7
    %v503 = vsub.s32 1, %v502
    %v504 = vrot.slane %v495, %v503
    %v539 = vunpack.c.l.b16 %v463
    %v540 = vunpack.c.h.b16 %v463
    %v541 = vunpack.c.l.b16 %v464
    %v542 = vunpack.c.h.b16 %v464
    %v543 = vunpack.c.l.b16 %v465
    %v544 = vunpack.c.h.b16 %v465
    %v545 = vunpack.c.l.b16 %v466
    %v546 = vunpack.c.h.b16 %v466
    %v547 = vunpack.c.l.b16 %v467
    %v548 = vunpack.c.h.b16 %v467
    %v549 = vunpack.c.l.b16 %v468
    %v550 = vunpack.c.h.b16 %v468
    %v551 = vunpack.c.l.b16 %v469
    %v552 = vunpack.c.h.b16 %v469
    %v553 = vunpack.c.l.b16 %v470
    %v554 = vunpack.c.h.b16 %v470
    %v555 = vunpack.c.l.b16 %v471
    %v556 = vunpack.c.h.b16 %v471
    %v557 = vunpack.c.l.b16 %v472
    %v558 = vunpack.c.h.b16 %v472
    %v559 = vunpack.c.l.b16 %v473
    %v560 = vunpack.c.h.b16 %v473
    %v561 = vunpack.c.l.b16 %v474
    %v562 = vunpack.c.h.b16 %v474
    %v563 = vunpack.c.l.b16 %v475
    %v564 = vunpack.c.h.b16 %v475
    %v565 = vunpack.c.l.b16 %v476
    %v566 = vunpack.c.h.b16 %v476
    %v567 = vunpack.c.l.b16 %v477
    %v568 = vunpack.c.h.b16 %v477
    %v569 = vunpack.c.l.b16 %v478
    %v570 = vunpack.c.h.b16 %v478
    %v571 = vunpack.c.l.b16 %v479
    %v572 = vunpack.c.h.b16 %v479
    %v573 = vunpack.c.l.b16 %v480
    %v574 = vunpack.c.h.b16 %v480
    %v575 = vunpack.c.l.b16 %v481
    %v576 = vunpack.c.h.b16 %v481
    %v577 = vunpack.c.l.b16 %v482
    %v578 = vunpack.c.h.b16 %v482
    %v579 = vunpack.c.l.b16 %v483
    %v580 = vunpack.c.h.b16 %v483
    %v581 = vunpack.c.l.b16 %v484
    %v582 = vunpack.c.h.b16 %v484
    %v583 = vunpack.c.l.b16 %v485
    %v584 = vunpack.c.h.b16 %v485
    %v585 = vunpack.c.l.b16 %v486
    %v586 = vunpack.c.h.b16 %v486
    %v587 = vunpack.c.l.b16 %v487
    %v588 = vunpack.c.h.b16 %v487
    %v589 = vunpack.c.l.b16 %v488
    %v590 = vunpack.c.h.b16 %v488
    %v591 = vunpack.c.l.b16 %v489
    %v592 = vunpack.c.h.b16 %v489
    %v593 = vunpack.c.l.b16 %v490
    %v594 = vunpack.c.h.b16 %v490
    %v595 = vunpack.c.l.b16 %v491
    %v596 = vunpack.c.h.b16 %v491
    %v597 = vunpack.c.l.b16 %v492
    %v598 = vunpack.c.h.b16 %v492
    %v599 = vunpack.c.l.b16 %v493
    %v600 = vunpack.c.h.b16 %v493
    %v601 = vunpack.c.l.b16 %v494
    %v602 = vunpack.c.h.b16 %v494
    %v603 = vpack.c.b16 %v541, %v539
    %v604 = vpack.c.b16 %v542, %v540
    %v605 = vpack.c.b16 %v545, %v543
    %v606 = vpack.c.b16 %v546, %v544
    %v607 = vpack.c.b16 %v549, %v547
    %v608 = vpack.c.b16 %v550, %v548
    %v609 = vpack.c.b16 %v553, %v551
    %v610 = vpack.c.b16 %v554, %v552
    %v611 = vpack.c.b16 %v557, %v555
    %v612 = vpack.c.b16 %v558, %v556
    %v613 = vpack.c.b16 %v561, %v559
    %v614 = vpack.c.b16 %v562, %v560
    %v615 = vpack.c.b16 %v565, %v563
    %v616 = vpack.c.b16 %v566, %v564
    %v617 = vpack.c.b16 %v569, %v567
    %v618 = vpack.c.b16 %v570, %v568
    %v619 = vpack.c.b16 %v573, %v571
    %v620 = vpack.c.b16 %v574, %v572
    %v621 = vpack.c.b16 %v577, %v575
    %v622 = vpack.c.b16 %v578, %v576
    %v623 = vpack.c.b16 %v581, %v579
    %v624 = vpack.c.b16 %v582, %v580
    %v625 = vpack.c.b16 %v585, %v583
    %v626 = vpack.c.b16 %v586, %v584
    %v627 = vpack.c.b16 %v589, %v587
    %v628 = vpack.c.b16 %v590, %v588
    %v629 = vpack.c.b16 %v593, %v591
    %v630 = vpack.c.b16 %v594, %v592
    %v631 = vpack.c.b16 %v597, %v595
    %v632 = vpack.c.b16 %v598, %v596
    %v633 = vpack.c.b16 %v601, %v599
    %v634 = vpack.c.b16 %v602, %v600
    %667 = vmatprep.subr.bf16.mxu0 %v604
    %668 = vmatpush1.bf16.msra.mxu0 %v603
    %669 = vmatprep.subr.bf16.mxu0 %v606
    %670 = vmatpush1.bf16.msra.mxu0 %v605
    %671 = vmatprep.subr.bf16.mxu0 %v608
    %672 = vmatpush1.bf16.msra.mxu0 %v607
    %673 = vmatprep.subr.bf16.mxu0 %v610
    %674 = vmatpush1.bf16.msra.mxu0 %v609
    %675 = vmatprep.subr.bf16.mxu0 %v612
    %676 = vmatpush1.bf16.msra.mxu0 %v611
    %677 = vmatprep.subr.bf16.mxu0 %v614
    %678 = vmatpush1.bf16.msra.mxu0 %v613
    %679 = vmatprep.subr.bf16.mxu0 %v616
    %680 = vmatpush1.bf16.msra.mxu0 %v615
    %681 = vmatprep.subr.bf16.mxu0 %v618
    %682 = vmatpush1.bf16.msra.mxu0 %v617
    %683 = vmatprep.subr.bf16.mxu0 %v620
    %684 = vmatpush1.bf16.msra.mxu0 %v619
    %685 = vmatprep.subr.bf16.mxu0 %v622
    %686 = vmatpush1.bf16.msra.mxu0 %v621
    %687 = vmatprep.subr.bf16.mxu0 %v624
    %688 = vmatpush1.bf16.msra.mxu0 %v623
    %689 = vmatprep.subr.bf16.mxu0 %v626
    %690 = vmatpush1.bf16.msra.mxu0 %v625
    %691 = vmatprep.subr.bf16.mxu0 %v628
    %692 = vmatpush1.bf16.msra.mxu0 %v627
    %693 = vmatprep.subr.bf16.mxu0 %v630
    %694 = vmatpush1.bf16.msra.mxu0 %v629
    %695 = vmatprep.subr.bf16.mxu0 %v632
    %696 = vmatpush1.bf16.msra.mxu0 %v631
    %697 = vmatprep.subr.bf16.mxu0 %v634
    %698 = vmatpush1.bf16.msra.mxu0 %v633
    %699 = vmatprep.mubr.bf16.mxu0 %v211
    %700 = vmatmul.mubr.bf16.gmra.mrb[0].mxu0 %v210
    %v701 = vpop.f32.mrb[0].mxu0
    %v702 = vadd.f32 %v500, %v701
    %v703 = vpop.f32.mrb[0].mxu0
    %v704 = vadd.f32 %v504, %v703
    %v705 = vpop.f32.mrb[0].mxu0
    %v706 = vadd.f32 %v500, %v705
    %v707 = vpop.f32.mrb[0].mxu0
    %v708 = vadd.f32 %v504, %v707
    %709 = vdwg.mxu0
    %v710 = vmax.f32 %v702, 0.0
    %v711 = vmax.f32 %v704, 0.0
    %v712 = vmax.f32 %v706, 0.0
    %v713 = vmax.f32 %v708, 0.0
    %v714 = vld [vmem:[%s7] ss:$2 sm:$0x3]
    %v716 = vlaneseq
    %v717 = vshrl.u32 %v716, 7
    %v718 = vsub.s32 0, %v717
    %v719 = vrot.slane %v714, %v718
    %v720 = vlaneseq
    %v721 = vshrl.u32 %v720, 7
    %v722 = vsub.s32 1, %v721
    %v723 = vrot.slane %v714, %v722
    %v726 = vmul.f32 %v459, %v719
    %v727 = vmul.f32 %v460, %v723
    %v728 = vmul.f32 %v461, %v719
    %v729 = vmul.f32 %v462, %v723
    %v730 = vadd.f32 %v726, %v727
    %731 = vadd.xlane.f32.xlu0 %v730
    %v732 = vpop.xlane.xlu0 %731
    %v733 = vadd.f32 %v728, %v729
    %734 = vadd.xlane.f32.xlu0 %v733
    %v735 = vpop.xlane.xlu0 %734
    %v736 = vld [vmem:[%s8] sm:$0x1]
    %v738 = vlaneseq
    %v739 = vshrl.u32 %v738, 7
    %v740 = vsub.s32 0, %v739
    %v741 = vrot.slane %v736, %v740
    %v743 = vadd.f32 %v732, %v741
    %v744 = vadd.f32 %v735, %v741
    %s745 = scalar_lea.vmem %s7, 1
    %v746 = vld [vmem:[%s745] ss:$2 sm:$0x3]
    %v748 = vlaneseq
    %v749 = vshrl.u32 %v748, 7
    %v750 = vsub.s32 0, %v749
    %v751 = vrot.slane %v746, %v750
    %v752 = vlaneseq
    %v753 = vshrl.u32 %v752, 7
    %v754 = vsub.s32 1, %v753
    %v755 = vrot.slane %v746, %v754
    %v758 = vmul.f32 %v710, %v751
    %v759 = vmul.f32 %v711, %v755
    %v760 = vmul.f32 %v712, %v751
    %v761 = vmul.f32 %v713, %v755
    %v762 = vadd.f32 %v758, %v759
    %763 = vadd.xlane.f32.xlu0 %v762
    %v764 = vpop.xlane.xlu0 %763
    %v765 = vadd.f32 %v760, %v761
    %766 = vadd.xlane.f32.xlu0 %v765
    %v767 = vpop.xlane.xlu0 %766
    %v768 = vadd.f32 %v764, %v741
    %v769 = vadd.f32 %v767, %v741
    %vm770 = vcmask 7168
    %v771 = vsel %vm770, %v743, %v768
    %v772 = vsel %vm770, %v744, %v769
    %vm773 = vcmask 15360
    %774 = vst.msk [vmem:[%s9] sm:$0xff] %vm773, %v771
    %775 = vst.msk [vmem:[%s9 + $0x8] sm:$0xff] %vm773, %v772
    // Predicated region
    $region46: #{critic_forward.1} parent=1 // pred_check
      _
    $region47: #{critic_forward.1} parent=1 // pred_check_branch
      %777 = sbr.rel (0) target = $region49
    $region48: #{critic_forward.1} parent=1 // pred_region
      _
    $region49: #{critic_forward.1} parent=1 // pred_fallthru
      _
    // Predicated region
    $region50: #{critic_forward.1} parent=1 // pred_check
      _
    $region51: #{critic_forward.1} parent=1 // pred_check_branch
      %779 = sbr.rel (0) target = $region53
    $region52: #{critic_forward.1} parent=1 // pred_region
      _
    $region53: #{critic_forward.1} parent=1 // pred_fallthru
      _
    %780 = vsyncpa [#allocation3], 1
    %781 = vsyncpa [#allocation5], 1

</llo_original>
